<compile_context>
chip_gen: v6e
topology: v6e:2x2x1
jax: 0.10.0
libtpu: 0.0.40
codegen_flags: <defaults>
</compile_context>

<pallas_src>
import functools

import jax
import jax.numpy as jnp
from jax import lax
from jax.experimental import pallas as pl
from jax.experimental.pallas import tpu as pltpu

# small, module-consistent synthetic shapes
B = 8      # batch (number of triplets)  -- 3*B must be a multiple of 8
S = 8      # sequence length
H = 32     # token-embedding width
D = 32     # sentence-embedding width
V = 100    # vocab size
TEMPERATURE = 0.05
LANE = 128


def _round_up(x, m):
    return (x + m - 1) // m * m


# ---------------------------------------------------------------------------
# Fused kernel: one-hot lookup (folded table) + mean pool + softmax triplet loss
# ---------------------------------------------------------------------------
def _fused_triplet_kernel(ids_ref, table_ref, b_ref, loss_ref,
                          *, temperature, batch):
    # ids_ref  : (3*B, S)  int32     token ids for [text | pos | neg]
    # table_ref: (Vp, Dp)  bf16      pre-folded (emb_table @ W), zero-padded
    # b_ref    : (1, Dp)   f32       zero-padded projection bias
    # loss_ref : (1, 1)    f32       scalar loss (SMEM)
    ids = ids_ref[...]                                            # (3B, S)
    n_rows, s = ids.shape
    vp = table_ref.shape[0]

    # --- embedder: one-hot -> mean pool (XLU sublane reduce) -> single MXU matmul ---
    col = lax.broadcasted_iota(jnp.int32, (n_rows, s, vp), 2)     # (3B, S, Vp)
    onehot = (col == ids[:, :, None]).astype(jnp.float32)         # (3B, S, Vp)
    # hist[i, v] = (1/S) * #{s : ids[i, s] == v}; exact in bf16 (S = 8)
    hist = (jnp.sum(onehot, axis=1) * (1.0 / s)).astype(jnp.bfloat16)   # (3B, Vp)
    emb = jnp.dot(hist, table_ref[...],
                  preferred_element_type=jnp.float32) + b_ref[...]      # (3B, Dp) f32

    t = emb[0 * batch:1 * batch]                                  # (B, Dp)
    p = emb[1 * batch:2 * batch]                                  # (B, Dp)
    n = emb[2 * batch:3 * batch]                                  # (B, Dp)

    # --- TripletInBatchNegSoftmaxContrastLoss ---
    eps = 1e-8
    # per-vector norm clamp (matches torch cosine_similarity's per-norm eps clamp)
    inv_t = lax.rsqrt(jnp.maximum(jnp.sum(t * t, axis=-1, keepdims=True), eps * eps))
    inv_p = lax.rsqrt(jnp.maximum(jnp.sum(p * p, axis=-1, keepdims=True), eps * eps))
    inv_n = lax.rsqrt(jnp.maximum(jnp.sum(n * n, axis=-1, keepdims=True), eps * eps))

    inv_temp = 1.0 / temperature                                  # folded Python const
    t_hat = t * (inv_t * inv_temp)                                # (B, Dp)
    p_hat = p * inv_p                                             # (B, Dp)
    n_hat = n * inv_n                                             # (B, Dp)

    # sim_pos[i]   = cos(t_i, p_i) / T
    sim_pos = jnp.sum(t_hat * p_hat, axis=-1, keepdims=True)      # (B, 1)
    # sim_neg[i,j] = cos(t_i, n_j) / T   (last-dim contraction, no transpose)
    sim_neg = lax.dot_general(t_hat, n_hat, (((1,), (1,)), ((), ())),
                              preferred_element_type=jnp.float32)  # (B, B)

    # CrossEntropy over logits [sim_pos | sim_neg], target class 0
    m = jnp.maximum(sim_pos, jnp.max(sim_neg, axis=-1, keepdims=True))        # (B, 1)
    lse = jnp.log(jnp.exp(sim_pos - m)
                  + jnp.sum(jnp.exp(sim_neg - m), axis=-1, keepdims=True)) + m
    loss_ref[0, 0] = jnp.mean(lse - sim_pos)


# ---------------------------------------------------------------------------
# Module wrapper
# ---------------------------------------------------------------------------
def embedder_for_triplet_in_batch_neg_train_forward(
    params, text_ids, text_pos_ids, text_neg_ids, temperature=TEMPERATURE
):
    b, s = text_ids.shape
    v, h = params["emb_table"].shape
    d = params["proj_w"].shape[1]
    assert (3 * b) % 8 == 0, "3*B must be a multiple of 8 for aligned sublane slices"

    vp = _round_up(v, LANE)
    dp = _round_up(d, LANE)

    # stack the three views into one id tensor (single fused forward), lane-dense (3B, S)
    ids = jnp.concatenate([text_ids, text_pos_ids, text_neg_ids], axis=0).astype(jnp.int32)

    # fold the projection into the embedding table at trace time (one tiny XLA
    # matmul), pad to lane-dense 128-wide tiles (zeros are semantically inert),
    # and store as bf16 for the MXU (numerics trade-off flagged above).
    table_proj = jnp.dot(params["emb_table"].astype(jnp.float32),
                         params["proj_w"].astype(jnp.float32))          # (V, D) f32
    table_pad = jnp.zeros((vp, dp), jnp.bfloat16).at[:v, :d].set(
        table_proj.astype(jnp.bfloat16))
    b_pad = jnp.zeros((1, dp), jnp.float32).at[:, :d].set(
        params["proj_b"].reshape(1, d).astype(jnp.float32))

    kernel = functools.partial(_fused_triplet_kernel,
                               temperature=temperature, batch=b)
    loss = pl.pallas_call(
        kernel,
        out_shape=jax.ShapeDtypeStruct((1, 1), jnp.float32),
        in_specs=[pl.BlockSpec(memory_space=pltpu.MemorySpace.VMEM)] * 3,
        out_specs=pl.BlockSpec(memory_space=pltpu.MemorySpace.SMEM),
    )(ids, table_pad, b_pad)
    return {"loss": loss[0, 0]}


if __name__ == "__main__":
    key = jax.random.PRNGKey(0)
    k_emb, k_w, k_b, k_t, k_p, k_n = jax.random.split(key, 6)

    # deterministic synthetic embedder parameters
    params = {
        "emb_table": jax.random.normal(k_emb, (V, H), dtype=jnp.float32) * 0.02,
        "proj_w": jax.random.normal(k_w, (H, D), dtype=jnp.float32) * 0.1,
        "proj_b": jax.random.normal(k_b, (1, D), dtype=jnp.float32) * 0.01,
    }

    text_ids = jax.random.randint(k_t, (B, S), 0, V, dtype=jnp.int32)
    text_pos_ids = jax.random.randint(k_p, (B, S), 0, V, dtype=jnp.int32)
    text_neg_ids = jax.random.randint(k_n, (B, S), 0, V, dtype=jnp.int32)

    out = embedder_for_triplet_in_batch_neg_train_forward(
        params, text_ids, text_pos_ids, text_neg_ids
    )
    jax.block_until_ready(out["loss"])
    print("KERNEL_OK")
</pallas_src>

<mosaic_0001>
module attributes {stable_mosaic.version = 11 : i64} {
  func.func @_fused_triplet_kernel(%arg0: memref<24x8xi32, #tpu.memory_space<vmem>>, %arg1: memref<128x128xbf16, #tpu.memory_space<vmem>>, %arg2: memref<1x128xf32, #tpu.memory_space<vmem>>, %arg3: memref<1x1xf32, #tpu.memory_space<smem>>) attributes {dimension_semantics = [], scalar_prefetch = 0 : i64, scratch_operands = 0 : i64, tpu.core_type = #tpu.core_type<tc>} {
    %c0 = arith.constant 0 : index
    %c0_0 = arith.constant 0 : index
    %0 = vector.load %arg0[%c0, %c0_0] : memref<24x8xi32, #tpu.memory_space<vmem>>, vector<24x8xi32>
    %1 = tpu.iota {dimensions = array<i32: 2>} : vector<24x8x128xi32>
    %2 = vector.shape_cast %0 : vector<24x8xi32> to vector<24x8x1xi32>
    %3 = vector.broadcast %2 : vector<24x8x1xi32> to vector<24x8x128xi32>
    %4 = arith.cmpi eq, %1, %3 : vector<24x8x128xi32>
    %5 = arith.extui %4 : vector<24x8x128xi1> to vector<24x8x128xi32>
    %6 = arith.sitofp %5 : vector<24x8x128xi32> to vector<24x8x128xf32>
    %cst = arith.constant dense<0.000000e+00> : vector<24x128xf32>
    %7 = vector.multi_reduction <add>, %6, %cst [1] : vector<24x8x128xf32> to vector<24x128xf32>
    %cst_1 = arith.constant 1.250000e-01 : f32
    %8 = vector.broadcast %cst_1 : f32 to vector<24x128xf32>
    %9 = arith.mulf %7, %8 : vector<24x128xf32>
    %10 = arith.truncf %9 : vector<24x128xf32> to vector<24x128xbf16>
    %c0_2 = arith.constant 0 : index
    %c0_3 = arith.constant 0 : index
    %11 = vector.load %arg1[%c0_2, %c0_3] : memref<128x128xbf16, #tpu.memory_space<vmem>>, vector<128x128xbf16>
    %cst_4 = arith.constant dense<0.000000e+00> : vector<24x128xf32>
    %12 = tpu.matmul %10, %11, %cst_4 {dimension_numbers = #tpu.dot_dimension_numbers<[1], [0], [0], [1], [0, 0, 1, 1], [], []>} : vector<24x128xbf16>, vector<128x128xbf16>, vector<24x128xf32> -> vector<24x128xf32>
    %c0_5 = arith.constant 0 : index
    %c0_6 = arith.constant 0 : index
    %13 = vector.load %arg2[%c0_5, %c0_6] : memref<1x128xf32, #tpu.memory_space<vmem>>, vector<1x128xf32>
    %14 = vector.broadcast %13 : vector<1x128xf32> to vector<24x128xf32>
    %15 = arith.addf %12, %14 : vector<24x128xf32>
    %16 = vector.extract_strided_slice %15 {offsets = [0, 0], sizes = [8, 128], strides = [1, 1]} : vector<24x128xf32> to vector<8x128xf32>
    %17 = vector.extract_strided_slice %15 {offsets = [8, 0], sizes = [8, 128], strides = [1, 1]} : vector<24x128xf32> to vector<8x128xf32>
    %18 = vector.extract_strided_slice %15 {offsets = [16, 0], sizes = [8, 128], strides = [1, 1]} : vector<24x128xf32> to vector<8x128xf32>
    %19 = arith.mulf %16, %16 : vector<8x128xf32>
    %cst_7 = arith.constant dense<0.000000e+00> : vector<8xf32>
    %20 = vector.multi_reduction <add>, %19, %cst_7 [1] : vector<8x128xf32> to vector<8xf32>
    %21 = vector.shape_cast %20 : vector<8xf32> to vector<8x1xf32>
    %cst_8 = arith.constant 1.000000e-16 : f32
    %22 = vector.broadcast %cst_8 : f32 to vector<8x1xf32>
    %23 = arith.maximumf %21, %22 : vector<8x1xf32>
    %24 = math.rsqrt %23 : vector<8x1xf32>
    %25 = arith.mulf %17, %17 : vector<8x128xf32>
    %cst_9 = arith.constant dense<0.000000e+00> : vector<8xf32>
    %26 = vector.multi_reduction <add>, %25, %cst_9 [1] : vector<8x128xf32> to vector<8xf32>
    %27 = vector.shape_cast %26 : vector<8xf32> to vector<8x1xf32>
    %cst_10 = arith.constant 1.000000e-16 : f32
    %28 = vector.broadcast %cst_10 : f32 to vector<8x1xf32>
    %29 = arith.maximumf %27, %28 : vector<8x1xf32>
    %30 = math.rsqrt %29 : vector<8x1xf32>
    %31 = arith.mulf %18, %18 : vector<8x128xf32>
    %cst_11 = arith.constant dense<0.000000e+00> : vector<8xf32>
    %32 = vector.multi_reduction <add>, %31, %cst_11 [1] : vector<8x128xf32> to vector<8xf32>
    %33 = vector.shape_cast %32 : vector<8xf32> to vector<8x1xf32>
    %cst_12 = arith.constant 1.000000e-16 : f32
    %34 = vector.broadcast %cst_12 : f32 to vector<8x1xf32>
    %35 = arith.maximumf %33, %34 : vector<8x1xf32>
    %36 = math.rsqrt %35 : vector<8x1xf32>
    %cst_13 = arith.constant 2.000000e+01 : f32
    %37 = vector.broadcast %cst_13 : f32 to vector<8x1xf32>
    %38 = arith.mulf %24, %37 : vector<8x1xf32>
    %39 = vector.broadcast %38 : vector<8x1xf32> to vector<8x128xf32>
    %40 = arith.mulf %16, %39 : vector<8x128xf32>
    %41 = vector.broadcast %30 : vector<8x1xf32> to vector<8x128xf32>
    %42 = arith.mulf %17, %41 : vector<8x128xf32>
    %43 = vector.broadcast %36 : vector<8x1xf32> to vector<8x128xf32>
    %44 = arith.mulf %18, %43 : vector<8x128xf32>
    %45 = arith.mulf %40, %42 : vector<8x128xf32>
    %cst_14 = arith.constant dense<0.000000e+00> : vector<8xf32>
    %46 = vector.multi_reduction <add>, %45, %cst_14 [1] : vector<8x128xf32> to vector<8xf32>
    %47 = vector.shape_cast %46 : vector<8xf32> to vector<8x1xf32>
    %cst_15 = arith.constant dense<0.000000e+00> : vector<8x8xf32>
    %48 = tpu.matmul %40, %44, %cst_15 {dimension_numbers = #tpu.dot_dimension_numbers<[1], [1], [0], [0], [0, 0, 1, 0], [], []>} : vector<8x128xf32>, vector<8x128xf32>, vector<8x8xf32> -> vector<8x8xf32>
    %cst_16 = arith.constant dense<0xFF800000> : vector<8xf32>
    %49 = vector.multi_reduction <maximumf>, %48, %cst_16 [1] : vector<8x8xf32> to vector<8xf32>
    %50 = vector.shape_cast %49 : vector<8xf32> to vector<8x1xf32>
    %51 = arith.maximumf %47, %50 : vector<8x1xf32>
    %52 = arith.subf %47, %51 : vector<8x1xf32>
    %53 = math.exp %52 : vector<8x1xf32>
    %54 = vector.broadcast %51 : vector<8x1xf32> to vector<8x8xf32>
    %55 = arith.subf %48, %54 : vector<8x8xf32>
    %56 = math.exp %55 : vector<8x8xf32>
    %cst_17 = arith.constant dense<0.000000e+00> : vector<8xf32>
    %57 = vector.multi_reduction <add>, %56, %cst_17 [1] : vector<8x8xf32> to vector<8xf32>
    %58 = vector.shape_cast %57 : vector<8xf32> to vector<8x1xf32>
    %59 = arith.addf %53, %58 : vector<8x1xf32>
    %60 = math.log %59 : vector<8x1xf32>
    %61 = arith.addf %60, %51 : vector<8x1xf32>
    %62 = arith.subf %61, %47 : vector<8x1xf32>
    %63 = vector.shape_cast %62 : vector<8x1xf32> to vector<1x8x1xf32>
    %cst_18 = arith.constant dense<0.000000e+00> : vector<1xf32>
    %64 = vector.multi_reduction <add>, %63, %cst_18 [1, 2] : vector<1x8x1xf32> to vector<1xf32>
    %65 = vector.shape_cast %64 : vector<1xf32> to vector<1x1x1xf32>
    %66 = vector.extract %65[0, 0, 0] : f32 from vector<1x1x1xf32>
    %cst_19 = arith.constant 8.000000e+00 : f32
    %67 = arith.divf %66, %cst_19 : f32
    %c0_20 = arith.constant 0 : index
    %c0_21 = arith.constant 0 : index
    %68 = memref.load %arg3[%c0_20, %c0_21] : memref<1x1xf32, #tpu.memory_space<smem>>
    memref.store %67, %arg3[%c0_20, %c0_21] : memref<1x1xf32, #tpu.memory_space<smem>>
    return
  }
}

</mosaic_0001>

<llo_original>
// kernel: tpu_custom_call.1
$region0: #{tpu_custom_call.1}
  #allocation0 [shape = 'u32[]', space=smem, size = 0x4, offset = 0x4, fixed_abs, tag = 'smem constant byte address 0x4 - core index']
  #allocation1 [shape = 'u32[144,128]{1,0:T(1,128)}', space=vmem, size = 0x12000, scoped, tag = 'internal scratch']
  %s0 = inlined_call_operand.vmem [shape: s32[24,8], index: 0, kind: input, shape index: {}]
  %s1 = inlined_call_operand.hbm [shape: bf16[128,128], index: 1, kind: input, shape index: {}]
  %s2 = inlined_call_operand.vmem [shape: f32[1,128], index: 2, kind: input, shape index: {}]
  %s3 = inlined_call_operand.hbm [shape: f32[1,1], index: 3, kind: output, shape index: {}]
  %s4 = sld [smem:[#allocation0]]
  $region26: #{tpu_custom_call.1} parent=0
    _
  %s6 = ssub.s32 1, %s4
  %s7 = scalar_select 0, %s6, %s4
  $region1: #{tpu_custom_call.1} parent=0
    #allocation2 [shape = 'u8[32768]{0}', space=vmem, size = 0x8000, scoped, tag = 'input window, operand 1, single buffered']
    #allocation3 [shape = 's32[1]{0}', space=sflag, size = 0x4, scoped, tag = 'scoped memory for tpu_custom_call.1']
    #allocation4 [shape = 's32[1]{0}', space=sflag, size = 0x4, scoped, tag = 'scoped memory for tpu_custom_call.1']
    #allocation5 [shape = 'u8[512]{0}', space=smem, size = 0x200, scoped, tag = 'output window, operand 0, single buffered']
    %8 = vsyncpa [#allocation3], 0
    %9 = vsyncpa [#allocation4], 0
    // Predicated region
    $region2: #{tpu_custom_call.1} parent=1 // pred_check
      _
    $region3: #{tpu_custom_call.1} parent=1 // pred_check_branch
      %11 = sbr.rel (0) target = $region5
    $region4: #{tpu_custom_call.1} parent=1 // pred_region
      _
    $region5: #{tpu_custom_call.1} parent=1 // pred_fallthru
      _
    // Predicated region
    $region6: #{tpu_custom_call.1} parent=1 // pred_check
      _
    $region7: #{tpu_custom_call.1} parent=1 // pred_check_branch
      %13 = sbr.rel (0) target = $region9
    $region8: #{tpu_custom_call.1} parent=1 // pred_region
      %s15 = ssub.s32 1024, 1024
      %16 = vsyncadd [#allocation3], %s15
      %s17 = sshll.u32 [#allocation2], 4
      %s18 = int_to_ptr.vmem [resolvable:$true] %s17
      %23 = dma.hbm_to_vmem [thread:$0]  %s1, 1024, %s18, [#allocation3], 64, 64, 4
    $region9: #{tpu_custom_call.1} parent=1 // pred_fallthru
      _
    // Predicated region
    $region10: #{tpu_custom_call.1} parent=1 // pred_check
      _
    $region11: #{tpu_custom_call.1} parent=1 // pred_check_branch
      %25 = sbr.rel (0) target = $region13
    $region12: #{tpu_custom_call.1} parent=1 // pred_region
      _
    $region13: #{tpu_custom_call.1} parent=1 // pred_fallthru
      _
    // Predicated region
    $region14: #{tpu_custom_call.1} parent=1 // pred_check
      _
    $region15: #{tpu_custom_call.1} parent=1 // pred_check_branch
      %27 = sbr.rel (0) target = $region17
    $region16: #{tpu_custom_call.1} parent=1 // pred_region
      %28 = dma.done [#allocation3], 1024
    $region17: #{tpu_custom_call.1} parent=1 // pred_fallthru
      _
    %v30 = vld [vmem:[%s0] sm:$0xff]
    %v31 = vld [vmem:[%s0 + $0x8] sm:$0xff]
    %v32 = vld [vmem:[%s0 + $0x10] sm:$0xff]
    %v33 = vlaneseq
    %v34 = vand.u32 %v33, 127
    %v35 = vlaneseq
    %v36 = vshrl.u32 %v35, 7
    %v37 = vsub.s32 0, %v36
    %v38 = vrot.slane %v30, %v37
    %40 = vbcast.lane.b32.xlu0 %v38, 256
    %v41 = vpop.permute.xlu0 %40
    %v42 = vlaneseq
    %v43 = vshrl.u32 %v42, 7
    %v44 = vsub.s32 1, %v43
    %v45 = vrot.slane %v30, %v44
    %47 = vbcast.lane.b32.xlu0 %v45, 256
    %v48 = vpop.permute.xlu0 %47
    %v49 = vlaneseq
    %v50 = vshrl.u32 %v49, 7
    %v51 = vsub.s32 2, %v50
    %v52 = vrot.slane %v30, %v51
    %54 = vbcast.lane.b32.xlu0 %v52, 256
    %v55 = vpop.permute.xlu0 %54
    %v56 = vlaneseq
    %v57 = vshrl.u32 %v56, 7
    %v58 = vsub.s32 3, %v57
    %v59 = vrot.slane %v30, %v58
    %61 = vbcast.lane.b32.xlu0 %v59, 256
    %v62 = vpop.permute.xlu0 %61
    %v63 = vlaneseq
    %v64 = vshrl.u32 %v63, 7
    %v65 = vsub.s32 4, %v64
    %v66 = vrot.slane %v30, %v65
    %68 = vbcast.lane.b32.xlu0 %v66, 256
    %v69 = vpop.permute.xlu0 %68
    %v70 = vlaneseq
    %v71 = vshrl.u32 %v70, 7
    %v72 = vsub.s32 5, %v71
    %v73 = vrot.slane %v30, %v72
    %75 = vbcast.lane.b32.xlu0 %v73, 256
    %v76 = vpop.permute.xlu0 %75
    %v77 = vlaneseq
    %v78 = vshrl.u32 %v77, 7
    %v79 = vsub.s32 6, %v78
    %v80 = vrot.slane %v30, %v79
    %82 = vbcast.lane.b32.xlu0 %v80, 256
    %v83 = vpop.permute.xlu0 %82
    %v84 = vlaneseq
    %v85 = vshrl.u32 %v84, 7
    %v86 = vsub.s32 7, %v85
    %v87 = vrot.slane %v30, %v86
    %89 = vbcast.lane.b32.xlu0 %v87, 256
    %v90 = vpop.permute.xlu0 %89
    %v91 = vlaneseq
    %v92 = vshrl.u32 %v91, 7
    %v93 = vsub.s32 0, %v92
    %v94 = vrot.slane %v31, %v93
    %96 = vbcast.lane.b32.xlu0 %v94, 256
    %v97 = vpop.permute.xlu0 %96
    %v98 = vlaneseq
    %v99 = vshrl.u32 %v98, 7
    %v100 = vsub.s32 1, %v99
    %v101 = vrot.slane %v31, %v100
    %103 = vbcast.lane.b32.xlu0 %v101, 256
    %v104 = vpop.permute.xlu0 %103
    %v105 = vlaneseq
    %v106 = vshrl.u32 %v105, 7
    %v107 = vsub.s32 2, %v106
    %v108 = vrot.slane %v31, %v107
    %110 = vbcast.lane.b32.xlu0 %v108, 256
    %v111 = vpop.permute.xlu0 %110
    %v112 = vlaneseq
    %v113 = vshrl.u32 %v112, 7
    %v114 = vsub.s32 3, %v113
    %v115 = vrot.slane %v31, %v114
    %117 = vbcast.lane.b32.xlu0 %v115, 256
    %v118 = vpop.permute.xlu0 %117
    %v119 = vlaneseq
    %v120 = vshrl.u32 %v119, 7
    %v121 = vsub.s32 4, %v120
    %v122 = vrot.slane %v31, %v121
    %124 = vbcast.lane.b32.xlu0 %v122, 256
    %v125 = vpop.permute.xlu0 %124
    %v126 = vlaneseq
    %v127 = vshrl.u32 %v126, 7
    %v128 = vsub.s32 5, %v127
    %v129 = vrot.slane %v31, %v128
    %131 = vbcast.lane.b32.xlu0 %v129, 256
    %v132 = vpop.permute.xlu0 %131
    %v133 = vlaneseq
    %v134 = vshrl.u32 %v133, 7
    %v135 = vsub.s32 6, %v134
    %v136 = vrot.slane %v31, %v135
    %138 = vbcast.lane.b32.xlu0 %v136, 256
    %v139 = vpop.permute.xlu0 %138
    %v140 = vlaneseq
    %v141 = vshrl.u32 %v140, 7
    %v142 = vsub.s32 7, %v141
    %v143 = vrot.slane %v31, %v142
    %145 = vbcast.lane.b32.xlu0 %v143, 256
    %v146 = vpop.permute.xlu0 %145
    %v147 = vlaneseq
    %v148 = vshrl.u32 %v147, 7
    %v149 = vsub.s32 0, %v148
    %v150 = vrot.slane %v32, %v149
    %152 = vbcast.lane.b32.xlu0 %v150, 256
    %v153 = vpop.permute.xlu0 %152
    %v154 = vlaneseq
    %v155 = vshrl.u32 %v154, 7
    %v156 = vsub.s32 1, %v155
    %v157 = vrot.slane %v32, %v156
    %159 = vbcast.lane.b32.xlu0 %v157, 256
    %v160 = vpop.permute.xlu0 %159
    %v161 = vlaneseq
    %v162 = vshrl.u32 %v161, 7
    %v163 = vsub.s32 2, %v162
    %v164 = vrot.slane %v32, %v163
    %166 = vbcast.lane.b32.xlu0 %v164, 256
    %v167 = vpop.permute.xlu0 %166
    %v168 = vlaneseq
    %v169 = vshrl.u32 %v168, 7
    %v170 = vsub.s32 3, %v169
    %v171 = vrot.slane %v32, %v170
    %173 = vbcast.lane.b32.xlu0 %v171, 256
    %v174 = vpop.permute.xlu0 %173
    %v175 = vlaneseq
    %v176 = vshrl.u32 %v175, 7
    %v177 = vsub.s32 4, %v176
    %v178 = vrot.slane %v32, %v177
    %180 = vbcast.lane.b32.xlu0 %v178, 256
    %v181 = vpop.permute.xlu0 %180
    %v182 = vlaneseq
    %v183 = vshrl.u32 %v182, 7
    %v184 = vsub.s32 5, %v183
    %v185 = vrot.slane %v32, %v184
    %187 = vbcast.lane.b32.xlu0 %v185, 256
    %v188 = vpop.permute.xlu0 %187
    %v189 = vlaneseq
    %v190 = vshrl.u32 %v189, 7
    %v191 = vsub.s32 6, %v190
    %v192 = vrot.slane %v32, %v191
    %194 = vbcast.lane.b32.xlu0 %v192, 256
    %v195 = vpop.permute.xlu0 %194
    %v196 = vlaneseq
    %v197 = vshrl.u32 %v196, 7
    %v198 = vsub.s32 7, %v197
    %v199 = vrot.slane %v32, %v198
    %201 = vbcast.lane.b32.xlu0 %v199, 256
    %v202 = vpop.permute.xlu0 %201
    %vm203 = vcmp.eq.s32.totalorder %v34, %v41
    %vm204 = vcmp.eq.s32.totalorder %v34, %v48
    %vm205 = vcmp.eq.s32.totalorder %v34, %v55
    %vm206 = vcmp.eq.s32.totalorder %v34, %v62
    %vm207 = vcmp.eq.s32.totalorder %v34, %v69
    %vm208 = vcmp.eq.s32.totalorder %v34, %v76
    %vm209 = vcmp.eq.s32.totalorder %v34, %v83
    %vm210 = vcmp.eq.s32.totalorder %v34, %v90
    %vm211 = vcmp.eq.s32.totalorder %v34, %v97
    %vm212 = vcmp.eq.s32.totalorder %v34, %v104
    %vm213 = vcmp.eq.s32.totalorder %v34, %v111
    %vm214 = vcmp.eq.s32.totalorder %v34, %v118
    %vm215 = vcmp.eq.s32.totalorder %v34, %v125
    %vm216 = vcmp.eq.s32.totalorder %v34, %v132
    %vm217 = vcmp.eq.s32.totalorder %v34, %v139
    %vm218 = vcmp.eq.s32.totalorder %v34, %v146
    %vm219 = vcmp.eq.s32.totalorder %v34, %v153
    %vm220 = vcmp.eq.s32.totalorder %v34, %v160
    %vm221 = vcmp.eq.s32.totalorder %v34, %v167
    %vm222 = vcmp.eq.s32.totalorder %v34, %v174
    %vm223 = vcmp.eq.s32.totalorder %v34, %v181
    %vm224 = vcmp.eq.s32.totalorder %v34, %v188
    %vm225 = vcmp.eq.s32.totalorder %v34, %v195
    %vm226 = vcmp.eq.s32.totalorder %v34, %v202
    %v227 = vsel %vm203, 1, 0
    %v228 = vsel %vm204, 1, 0
    %v229 = vsel %vm205, 1, 0
    %v230 = vsel %vm206, 1, 0
    %v231 = vsel %vm207, 1, 0
    %v232 = vsel %vm208, 1, 0
    %v233 = vsel %vm209, 1, 0
    %v234 = vsel %vm210, 1, 0
    %v235 = vsel %vm211, 1, 0
    %v236 = vsel %vm212, 1, 0
    %v237 = vsel %vm213, 1, 0
    %v238 = vsel %vm214, 1, 0
    %v239 = vsel %vm215, 1, 0
    %v240 = vsel %vm216, 1, 0
    %v241 = vsel %vm217, 1, 0
    %v242 = vsel %vm218, 1, 0
    %v243 = vsel %vm219, 1, 0
    %v244 = vsel %vm220, 1, 0
    %v245 = vsel %vm221, 1, 0
    %v246 = vsel %vm222, 1, 0
    %v247 = vsel %vm223, 1, 0
    %v248 = vsel %vm224, 1, 0
    %v249 = vsel %vm225, 1, 0
    %v250 = vsel %vm226, 1, 0
    %v251 = vcvt.s32.f32 %v227
    %v252 = vcvt.s32.f32 %v228
    %v253 = vcvt.s32.f32 %v229
    %v254 = vcvt.s32.f32 %v230
    %v255 = vcvt.s32.f32 %v231
    %v256 = vcvt.s32.f32 %v232
    %v257 = vcvt.s32.f32 %v233
    %v258 = vcvt.s32.f32 %v234
    %v259 = vcvt.s32.f32 %v235
    %v260 = vcvt.s32.f32 %v236
    %v261 = vcvt.s32.f32 %v237
    %v262 = vcvt.s32.f32 %v238
    %v263 = vcvt.s32.f32 %v239
    %v264 = vcvt.s32.f32 %v240
    %v265 = vcvt.s32.f32 %v241
    %v266 = vcvt.s32.f32 %v242
    %v267 = vcvt.s32.f32 %v243
    %v268 = vcvt.s32.f32 %v244
    %v269 = vcvt.s32.f32 %v245
    %v270 = vcvt.s32.f32 %v246
    %v271 = vcvt.s32.f32 %v247
    %v272 = vcvt.s32.f32 %v248
    %v273 = vcvt.s32.f32 %v249
    %v274 = vcvt.s32.f32 %v250
    %v275 = vrot.slane %v251, 4
    %v276 = vadd.f32 %v251, %v275
    %v277 = vrot.slane %v276, 2
    %v278 = vadd.f32 %v276, %v277
    %v279 = vrot.slane %v278, 1
    %v280 = vadd.f32 %v278, %v279
    %v281 = vrot.slane %v252, 4
    %v282 = vadd.f32 %v252, %v281
    %v283 = vrot.slane %v282, 2
    %v284 = vadd.f32 %v282, %v283
    %v285 = vrot.slane %v284, 1
    %v286 = vadd.f32 %v284, %v285
    %v287 = vrot.slane %v253, 4
    %v288 = vadd.f32 %v253, %v287
    %v289 = vrot.slane %v288, 2
    %v290 = vadd.f32 %v288, %v289
    %v291 = vrot.slane %v290, 1
    %v292 = vadd.f32 %v290, %v291
    %v293 = vrot.slane %v254, 4
    %v294 = vadd.f32 %v254, %v293
    %v295 = vrot.slane %v294, 2
    %v296 = vadd.f32 %v294, %v295
    %v297 = vrot.slane %v296, 1
    %v298 = vadd.f32 %v296, %v297
    %v299 = vrot.slane %v255, 4
    %v300 = vadd.f32 %v255, %v299
    %v301 = vrot.slane %v300, 2
    %v302 = vadd.f32 %v300, %v301
    %v303 = vrot.slane %v302, 1
    %v304 = vadd.f32 %v302, %v303
    %v305 = vrot.slane %v256, 4
    %v306 = vadd.f32 %v256, %v305
    %v307 = vrot.slane %v306, 2
    %v308 = vadd.f32 %v306, %v307
    %v309 = vrot.slane %v308, 1
    %v310 = vadd.f32 %v308, %v309
    %v311 = vrot.slane %v257, 4
    %v312 = vadd.f32 %v257, %v311
    %v313 = vrot.slane %v312, 2
    %v314 = vadd.f32 %v312, %v313
    %v315 = vrot.slane %v314, 1
    %v316 = vadd.f32 %v314, %v315
    %v317 = vrot.slane %v258, 4
    %v318 = vadd.f32 %v258, %v317
    %v319 = vrot.slane %v318, 2
    %v320 = vadd.f32 %v318, %v319
    %v321 = vrot.slane %v320, 1
    %v322 = vadd.f32 %v320, %v321
    %v323 = vrot.slane %v259, 4
    %v324 = vadd.f32 %v259, %v323
    %v325 = vrot.slane %v324, 2
    %v326 = vadd.f32 %v324, %v325
    %v327 = vrot.slane %v326, 1
    %v328 = vadd.f32 %v326, %v327
    %v329 = vrot.slane %v260, 4
    %v330 = vadd.f32 %v260, %v329
    %v331 = vrot.slane %v330, 2
    %v332 = vadd.f32 %v330, %v331
    %v333 = vrot.slane %v332, 1
    %v334 = vadd.f32 %v332, %v333
    %v335 = vrot.slane %v261, 4
    %v336 = vadd.f32 %v261, %v335
    %v337 = vrot.slane %v336, 2
    %v338 = vadd.f32 %v336, %v337
    %v339 = vrot.slane %v338, 1
    %v340 = vadd.f32 %v338, %v339
    %v341 = vrot.slane %v262, 4
    %v342 = vadd.f32 %v262, %v341
    %v343 = vrot.slane %v342, 2
    %v344 = vadd.f32 %v342, %v343
    %v345 = vrot.slane %v344, 1
    %v346 = vadd.f32 %v344, %v345
    %v347 = vrot.slane %v263, 4
    %v348 = vadd.f32 %v263, %v347
    %v349 = vrot.slane %v348, 2
    %v350 = vadd.f32 %v348, %v349
    %v351 = vrot.slane %v350, 1
    %v352 = vadd.f32 %v350, %v351
    %v353 = vrot.slane %v264, 4
    %v354 = vadd.f32 %v264, %v353
    %v355 = vrot.slane %v354, 2
    %v356 = vadd.f32 %v354, %v355
    %v357 = vrot.slane %v356, 1
    %v358 = vadd.f32 %v356, %v357
    %v359 = vrot.slane %v265, 4
    %v360 = vadd.f32 %v265, %v359
    %v361 = vrot.slane %v360, 2
    %v362 = vadd.f32 %v360, %v361
    %v363 = vrot.slane %v362, 1
    %v364 = vadd.f32 %v362, %v363
    %v365 = vrot.slane %v266, 4
    %v366 = vadd.f32 %v266, %v365
    %v367 = vrot.slane %v366, 2
    %v368 = vadd.f32 %v366, %v367
    %v369 = vrot.slane %v368, 1
    %v370 = vadd.f32 %v368, %v369
    %v371 = vrot.slane %v267, 4
    %v372 = vadd.f32 %v267, %v371
    %v373 = vrot.slane %v372, 2
    %v374 = vadd.f32 %v372, %v373
    %v375 = vrot.slane %v374, 1
    %v376 = vadd.f32 %v374, %v375
    %v377 = vrot.slane %v268, 4
    %v378 = vadd.f32 %v268, %v377
    %v379 = vrot.slane %v378, 2
    %v380 = vadd.f32 %v378, %v379
    %v381 = vrot.slane %v380, 1
    %v382 = vadd.f32 %v380, %v381
    %v383 = vrot.slane %v269, 4
    %v384 = vadd.f32 %v269, %v383
    %v385 = vrot.slane %v384, 2
    %v386 = vadd.f32 %v384, %v385
    %v387 = vrot.slane %v386, 1
    %v388 = vadd.f32 %v386, %v387
    %v389 = vrot.slane %v270, 4
    %v390 = vadd.f32 %v270, %v389
    %v391 = vrot.slane %v390, 2
    %v392 = vadd.f32 %v390, %v391
    %v393 = vrot.slane %v392, 1
    %v394 = vadd.f32 %v392, %v393
    %v395 = vrot.slane %v271, 4
    %v396 = vadd.f32 %v271, %v395
    %v397 = vrot.slane %v396, 2
    %v398 = vadd.f32 %v396, %v397
    %v399 = vrot.slane %v398, 1
    %v400 = vadd.f32 %v398, %v399
    %v401 = vrot.slane %v272, 4
    %v402 = vadd.f32 %v272, %v401
    %v403 = vrot.slane %v402, 2
    %v404 = vadd.f32 %v402, %v403
    %v405 = vrot.slane %v404, 1
    %v406 = vadd.f32 %v404, %v405
    %v407 = vrot.slane %v273, 4
    %v408 = vadd.f32 %v273, %v407
    %v409 = vrot.slane %v408, 2
    %v410 = vadd.f32 %v408, %v409
    %v411 = vrot.slane %v410, 1
    %v412 = vadd.f32 %v410, %v411
    %v413 = vrot.slane %v274, 4
    %v414 = vadd.f32 %v274, %v413
    %v415 = vrot.slane %v414, 2
    %v416 = vadd.f32 %v414, %v415
    %v417 = vrot.slane %v416, 1
    %v418 = vadd.f32 %v416, %v417
    %v419 = vmul.f32 %v280, 0.125
    %v420 = vmul.f32 %v286, 0.125
    %v421 = vmul.f32 %v292, 0.125
    %v422 = vmul.f32 %v298, 0.125
    %v423 = vmul.f32 %v304, 0.125
    %v424 = vmul.f32 %v310, 0.125
    %v425 = vmul.f32 %v316, 0.125
    %v426 = vmul.f32 %v322, 0.125
    %v427 = vmul.f32 %v328, 0.125
    %v428 = vmul.f32 %v334, 0.125
    %v429 = vmul.f32 %v340, 0.125
    %v430 = vmul.f32 %v346, 0.125
    %v431 = vmul.f32 %v352, 0.125
    %v432 = vmul.f32 %v358, 0.125
    %v433 = vmul.f32 %v364, 0.125
    %v434 = vmul.f32 %v370, 0.125
    %v435 = vmul.f32 %v376, 0.125
    %v436 = vmul.f32 %v382, 0.125
    %v437 = vmul.f32 %v388, 0.125
    %v438 = vmul.f32 %v394, 0.125
    %v439 = vmul.f32 %v400, 0.125
    %v440 = vmul.f32 %v406, 0.125
    %v441 = vmul.f32 %v412, 0.125
    %v442 = vmul.f32 %v418, 0.125
    %v443 = vpack.c.bf16 %v419, %v419
    %v444 = vpack.c.bf16 %v420, %v420
    %v445 = vpack.c.bf16 %v421, %v421
    %v446 = vpack.c.bf16 %v422, %v422
    %v447 = vpack.c.bf16 %v423, %v423
    %v448 = vpack.c.bf16 %v424, %v424
    %v449 = vpack.c.bf16 %v425, %v425
    %v450 = vpack.c.bf16 %v426, %v426
    %v451 = vpack.c.bf16 %v427, %v427
    %v452 = vpack.c.bf16 %v428, %v428
    %v453 = vpack.c.bf16 %v429, %v429
    %v454 = vpack.c.bf16 %v430, %v430
    %v455 = vpack.c.bf16 %v431, %v431
    %v456 = vpack.c.bf16 %v432, %v432
    %v457 = vpack.c.bf16 %v433, %v433
    %v458 = vpack.c.bf16 %v434, %v434
    %v459 = vpack.c.bf16 %v435, %v435
    %v460 = vpack.c.bf16 %v436, %v436
    %v461 = vpack.c.bf16 %v437, %v437
    %v462 = vpack.c.bf16 %v438, %v438
    %v463 = vpack.c.bf16 %v439, %v439
    %v464 = vpack.c.bf16 %v440, %v440
    %v465 = vpack.c.bf16 %v441, %v441
    %v466 = vpack.c.bf16 %v442, %v442
    %v467 = vld [vmem:[#allocation2] sm:$0xf]
    %v468 = vld [vmem:[#allocation2 + $0x4] sm:$0xf]
    %v469 = vld [vmem:[#allocation2 + $0x8] sm:$0xf]
    %v470 = vld [vmem:[#allocation2 + $0xc] sm:$0xf]
    %v471 = vld [vmem:[#allocation2 + $0x10] sm:$0xf]
    %v472 = vld [vmem:[#allocation2 + $0x14] sm:$0xf]
    %v473 = vld [vmem:[#allocation2 + $0x18] sm:$0xf]
    %v474 = vld [vmem:[#allocation2 + $0x1c] sm:$0xf]
    %v475 = vld [vmem:[#allocation2 + $0x20] sm:$0xf]
    %v476 = vld [vmem:[#allocation2 + $0x24] sm:$0xf]
    %v477 = vld [vmem:[#allocation2 + $0x28] sm:$0xf]
    %v478 = vld [vmem:[#allocation2 + $0x2c] sm:$0xf]
    %v479 = vld [vmem:[#allocation2 + $0x30] sm:$0xf]
    %v480 = vld [vmem:[#allocation2 + $0x34] sm:$0xf]
    %v481 = vld [vmem:[#allocation2 + $0x38] sm:$0xf]
    %v482 = vld [vmem:[#allocation2 + $0x3c] sm:$0xf]
    %v483 = vld [vmem:[%s2] sm:$0x1]
    %v485 = vlaneseq
    %v486 = vshrl.u32 %v485, 7
    %v487 = vsub.s32 0, %v486
    %v488 = vrot.slane %v483, %v487
    %v514 = vunpack.c.l.b16 %v443
    %v515 = vunpack.c.l.b16 %v444
    %v516 = vunpack.c.l.b16 %v445
    %v517 = vunpack.c.l.b16 %v446
    %v518 = vunpack.c.l.b16 %v447
    %v519 = vunpack.c.l.b16 %v448
    %v520 = vunpack.c.l.b16 %v449
    %v521 = vunpack.c.l.b16 %v450
    %v522 = vunpack.c.l.b16 %v451
    %v523 = vunpack.c.l.b16 %v452
    %v524 = vunpack.c.l.b16 %v453
    %v525 = vunpack.c.l.b16 %v454
    %v526 = vunpack.c.l.b16 %v455
    %v527 = vunpack.c.l.b16 %v456
    %v528 = vunpack.c.l.b16 %v457
    %v529 = vunpack.c.l.b16 %v458
    %v530 = vunpack.c.l.b16 %v459
    %v531 = vunpack.c.l.b16 %v460
    %v532 = vunpack.c.l.b16 %v461
    %v533 = vunpack.c.l.b16 %v462
    %v534 = vunpack.c.l.b16 %v463
    %v535 = vunpack.c.l.b16 %v464
    %v536 = vunpack.c.l.b16 %v465
    %v537 = vunpack.c.l.b16 %v466
    %vm538 = vcmask 1041409
    %v539 = vsel %vm538, %v515, %v514
    %vm540 = vcmask 1042434
    %v541 = vsel %vm540, %v516, %v539
    %vm542 = vcmask 1043459
    %v543 = vsel %vm542, %v517, %v541
    %vm544 = vcmask 1044484
    %v545 = vsel %vm544, %v518, %v543
    %vm546 = vcmask 1045509
    %v547 = vsel %vm546, %v519, %v545
    %vm548 = vcmask 1046534
    %v549 = vsel %vm548, %v520, %v547
    %vm550 = vcmask 1047559
    %v551 = vsel %vm550, %v521, %v549
    %v552 = vsel %vm538, %v523, %v522
    %v553 = vsel %vm540, %v524, %v552
    %v554 = vsel %vm542, %v525, %v553
    %v555 = vsel %vm544, %v526, %v554
    %v556 = vsel %vm546, %v527, %v555
    %v557 = vsel %vm548, %v528, %v556
    %v558 = vsel %vm550, %v529, %v557
    %v559 = vsel %vm538, %v531, %v530
    %v560 = vsel %vm540, %v532, %v559
    %v561 = vsel %vm542, %v533, %v560
    %v562 = vsel %vm544, %v534, %v561
    %v563 = vsel %vm546, %v535, %v562
    %v564 = vsel %vm548, %v536, %v563
    %v565 = vsel %vm550, %v537, %v564
    %v566 = vpack.c.b16 %v558, %v551
    %v567 = vpack.c.b16 %v565, %v565
    %v586 = vunpack.c.l.b16 %v467
    %v587 = vunpack.c.l.b16 %v468
    %v588 = vunpack.c.l.b16 %v469
    %v589 = vunpack.c.l.b16 %v470
    %v590 = vunpack.c.l.b16 %v471
    %v591 = vunpack.c.l.b16 %v472
    %v592 = vunpack.c.l.b16 %v473
    %v593 = vunpack.c.l.b16 %v474
    %v594 = vunpack.c.l.b16 %v475
    %v595 = vunpack.c.l.b16 %v476
    %v596 = vunpack.c.l.b16 %v477
    %v597 = vunpack.c.l.b16 %v478
    %v598 = vunpack.c.l.b16 %v479
    %v599 = vunpack.c.l.b16 %v480
    %v600 = vunpack.c.l.b16 %v481
    %v601 = vunpack.c.l.b16 %v482
    %v602 = vpack.c.b16 %v587, %v586
    %v603 = vpack.c.b16 %v589, %v588
    %v604 = vpack.c.b16 %v591, %v590
    %v605 = vpack.c.b16 %v593, %v592
    %v606 = vpack.c.b16 %v595, %v594
    %v607 = vpack.c.b16 %v597, %v596
    %v608 = vpack.c.b16 %v599, %v598
    %v609 = vpack.c.b16 %v601, %v600
    %618 = vmatprep.subr.bf16.mxu0 0
    %619 = vmatpush1.bf16.msra.mxu0 %v609
    %620 = vmatprep.subr.bf16.mxu0 0
    %621 = vmatpush1.bf16.msra.mxu0 %v608
    %622 = vmatprep.subr.bf16.mxu0 0
    %623 = vmatpush1.bf16.msra.mxu0 %v607
    %624 = vmatprep.subr.bf16.mxu0 0
    %625 = vmatpush1.bf16.msra.mxu0 %v606
    %626 = vmatprep.subr.bf16.mxu0 0
    %627 = vmatpush1.bf16.msra.mxu0 %v605
    %628 = vmatprep.subr.bf16.mxu0 0
    %629 = vmatpush1.bf16.msra.mxu0 %v604
    %630 = vmatprep.subr.bf16.mxu0 0
    %631 = vmatpush1.bf16.msra.mxu0 %v603
    %632 = vmatprep.subr.bf16.mxu0 0
    %633 = vmatpush1.bf16.msra.mxu0 %v602
    %634 = vmatprep.subr.bf16.mxu0 0
    %635 = vmatpush2.bf16.msra.mxu0 0
    %636 = vmatprep.subr.bf16.mxu0 0
    %637 = vmatpush2.bf16.msra.mxu0 0
    %638 = vmatprep.subr.bf16.mxu0 0
    %639 = vmatpush2.bf16.msra.mxu0 0
    %640 = vmatprep.subr.bf16.mxu0 0
    %641 = vmatpush2.bf16.msra.mxu0 0
    %642 = vmatprep.subr.bf16.mxu0 0
    %643 = vmatpush2.bf16.msra.mxu0 0
    %644 = vmatprep.subr.bf16.mxu0 0
    %645 = vmatpush2.bf16.msra.mxu0 0
    %646 = vmatprep.subr.bf16.mxu0 0
    %647 = vmatpush2.bf16.msra.mxu0 0
    %648 = vmatprep.subr.bf16.mxu0 0
    %649 = vmatpush2.bf16.msra.mxu0 0
    %650 = vmatprep.mubr.bf16.mxu0 0
    %651 = vmatmul.mubr.bf16.gmra.mxu0 %v566
    %v652 = vpop.f32.mrf.mxu0
    %v653 = vadd.f32 %v488, %v652
    %v654 = vpop.f32.mrf.mxu0
    %v655 = vpop.f32.mrf.mxu0
    %v656 = vadd.f32 %v488, %v655
    %v657 = vpop.f32.mrf.mxu0
    %658 = vmatprep.mubr.bf16.mxu0 0
    %659 = vmatmul.mubr.bf16.gmra.mxu0 %v567
    %v660 = vpop.f32.mrf.mxu0
    %v661 = vadd.f32 %v488, %v660
    %v662 = vpop.f32.mrf.mxu0
    %v663 = vpop.f32.mrf.mxu0
    %v664 = vpop.f32.mrf.mxu0
    %665 = vdwg.mxu0
    %v666 = vmul.f32 %v653, %v653
    %667 = vadd.xlane.f32.xlu0 %v666
    %v668 = vpop.xlane.xlu0 %667
    %v669 = vmax.f32 %v668, 1e-16
    %v670 = vrsqrt.pop %v669
    %v671 = vmul.f32 %v656, %v656
    %672 = vadd.xlane.f32.xlu0 %v671
    %v673 = vpop.xlane.xlu0 %672
    %v674 = vmax.f32 %v673, 1e-16
    %v675 = vrsqrt.pop %v674
    %v676 = vmul.f32 %v661, %v661
    %677 = vadd.xlane.f32.xlu0 %v676
    %v678 = vpop.xlane.xlu0 %677
    %v679 = vmax.f32 %v678, 1e-16
    %v680 = vrsqrt.pop %v679
    %v681 = vmul.f32 %v670, 20.0
    %v682 = vmul.f32 %v653, %v681
    %v683 = vmul.f32 %v656, %v675
    %v684 = vmul.f32 %v661, %v680
    %v685 = vmul.f32 %v682, %v683
    %686 = vadd.xlane.f32.xlu0 %v685
    %v687 = vpop.xlane.xlu0 %686
    %688 = vmatprep.subr.mxu0 0.0
    %689 = vmatpush1.xpose.msra.mxu0 0.0
    %690 = vmatprep.subr.mxu0 0.0
    %691 = vmatpush1.xpose.msra.mxu0 0.0
    %692 = vmatprep.subr.mxu0 0.0
    %693 = vmatpush1.xpose.msra.mxu0 0.0
    %694 = vmatprep.subr.mxu0 0.0
    %695 = vmatpush1.xpose.msra.mxu0 0.0
    %696 = vmatprep.subr.mxu0 0.0
    %697 = vmatpush1.xpose.msra.mxu0 0.0
    %698 = vmatprep.subr.mxu0 0.0
    %699 = vmatpush1.xpose.msra.mxu0 0.0
    %700 = vmatprep.subr.mxu0 0.0
    %701 = vmatpush1.xpose.msra.mxu0 0.0
    %702 = vmatprep.subr.mxu0 0.0
    %703 = vmatpush1.xpose.msra.mxu0 0.0
    %704 = vmatprep.subr.mxu0 0.0
    %705 = vmatpush1.xpose.msra.mxu0 0.0
    %706 = vmatprep.subr.mxu0 0.0
    %707 = vmatpush1.xpose.msra.mxu0 0.0
    %708 = vmatprep.subr.mxu0 0.0
    %709 = vmatpush1.xpose.msra.mxu0 0.0
    %710 = vmatprep.subr.mxu0 0.0
    %711 = vmatpush1.xpose.msra.mxu0 0.0
    %712 = vmatprep.subr.mxu0 0.0
    %713 = vmatpush1.xpose.msra.mxu0 0.0
    %714 = vmatprep.subr.mxu0 0.0
    %715 = vmatpush1.xpose.msra.mxu0 0.0
    %716 = vmatprep.subr.mxu0 0.0
    %717 = vmatpush1.xpose.msra.mxu0 0.0
    %718 = vmatprep.subr.mxu0 0.0
    %719 = vmatpush1.xpose.msra.mxu0 %v684
    %720 = vmatprep.subr.mxu0 0.0
    %721 = vmatpush2.xpose.msra.mxu0 0.0
    %722 = vmatprep.subr.mxu0 0.0
    %723 = vmatpush2.xpose.msra.mxu0 0.0
    %724 = vmatprep.subr.mxu0 0.0
    %725 = vmatpush2.xpose.msra.mxu0 0.0
    %726 = vmatprep.subr.mxu0 0.0
    %727 = vmatpush2.xpose.msra.mxu0 0.0
    %728 = vmatprep.subr.mxu0 0.0
    %729 = vmatpush2.xpose.msra.mxu0 0.0
    %730 = vmatprep.subr.mxu0 0.0
    %731 = vmatpush2.xpose.msra.mxu0 0.0
    %732 = vmatprep.subr.mxu0 0.0
    %733 = vmatpush2.xpose.msra.mxu0 0.0
    %734 = vmatprep.subr.mxu0 0.0
    %735 = vmatpush2.xpose.msra.mxu0 0.0
    %736 = vmatprep.subr.mxu0 0.0
    %737 = vmatpush2.xpose.msra.mxu0 0.0
    %738 = vmatprep.subr.mxu0 0.0
    %739 = vmatpush2.xpose.msra.mxu0 0.0
    %740 = vmatprep.subr.mxu0 0.0
    %741 = vmatpush2.xpose.msra.mxu0 0.0
    %742 = vmatprep.subr.mxu0 0.0
    %743 = vmatpush2.xpose.msra.mxu0 0.0
    %744 = vmatprep.subr.mxu0 0.0
    %745 = vmatpush2.xpose.msra.mxu0 0.0
    %746 = vmatprep.subr.mxu0 0.0
    %747 = vmatpush2.xpose.msra.mxu0 0.0
    %748 = vmatprep.subr.mxu0 0.0
    %749 = vmatpush2.xpose.msra.mxu0 0.0
    %750 = vmatprep.subr.mxu0 0.0
    %751 = vmatpush2.xpose.msra.mxu0 0.0
    %752 = vmatprep.mubr.f32.mxu0 0.0
    %753 = vmatmul.mubr.f32.gmra.mxu0 %v682
    %v754 = vpop.f32.mrf.mxu0
    %v755 = vadd.f32 0.0, %v754
    %v756 = vpop.f32.mrf.mxu0
    %757 = vdwg.mxu0
    %vm758 = vcmask 64512
    %v759 = vsel %vm758, %v755, -inf
    %760 = vmax.xlane.f32.xlu0 %v759
    %v761 = vpop.xlane.xlu0 %760
    %v762 = vmax.f32 %v687, %v761
    %v763 = vsub.f32 %v687, %v762
    %v764 = vmul.f32 %v763, 1.442695
    %v765 = vpow.pop %v764
    %v766 = vsub.f32 %v755, %v762
    %v767 = vmul.f32 %v766, 1.442695
    %v768 = vpow.pop %v767
    %v769 = vsel %vm758, %v768, 0.0
    %770 = vadd.xlane.f32.xlu0 %v769
    %v771 = vpop.xlane.xlu0 %770
    %v772 = vadd.f32 %v765, %v771
    %v773 = vlog2.pop %v772
    %v774 = vmul.f32 %v773, 0.6931472
    %v775 = vadd.f32 %v774, %v762
    %v776 = vsub.f32 %v775, %v687
    %vm777 = vcmask 7168
    %v778 = vsel %vm777, %v776, 0.0
    %779 = vadd.xlane.f32.xlu0 %v778
    %v780 = vpop.xlane.xlu0 %779
    %v781 = vrot.slane %v780, 4
    %v782 = vadd.f32 %v780, %v781
    %v783 = vrot.slane %v782, 2
    %v784 = vadd.f32 %v782, %v783
    %v785 = vrot.slane %v784, 1
    %v786 = vadd.f32 %v784, %v785
    %s787 = vtos %v786
    %v788 = vrcp.pop 8.0
    %s789 = vtos %v788
    %s790 = smul.f32 %s787, %s789
    %s791 = scalar_lea.smem [#allocation5], 0
    %792 = sst [smem:[%s791]] %s790
    // Predicated region
    $region18: #{tpu_custom_call.1} parent=1 // pred_check
      _
    $region19: #{tpu_custom_call.1} parent=1 // pred_check_branch
      %794 = sbr.rel (0) target = $region21
    $region20: #{tpu_custom_call.1} parent=1 // pred_region
      %s796 = ssub.s32 16, 16
      %797 = vsyncadd [#allocation4], %s796
      %800 = dma.smem_to_hbm [#allocation5], 16, %s3, [#allocation4]
    $region21: #{tpu_custom_call.1} parent=1 // pred_fallthru
      _
    // Predicated region
    $region22: #{tpu_custom_call.1} parent=1 // pred_check
      _
    $region23: #{tpu_custom_call.1} parent=1 // pred_check_branch
      %802 = sbr.rel (0) target = $region25
    $region24: #{tpu_custom_call.1} parent=1 // pred_region
      %803 = dma.done [#allocation4], 16
    $region25: #{tpu_custom_call.1} parent=1 // pred_fallthru
      _
    %804 = sfence
    %805 = vsyncpa [#allocation3], 1
    %806 = vsyncpa [#allocation4], 1

</llo_original>
